<compile_context>
chip_gen: v5e
topology: v5e:2x2
jax: 0.10.0
libtpu: 0.0.40
codegen_flags: <defaults>
</compile_context>

<pallas_src>
import functools

import jax
import jax.numpy as jnp
from jax.experimental import pallas as pl
from jax.experimental.pallas import tpu as pltpu

_SUBLANE = 16          # row-tile granularity (covers bf16 packing too)
_MAX_TM = 8192         # hard cap on rows/step: VMEM-safe on v7x (64 MiB phys)
_SPLIT_ROWS = 2048     # above this batch, force an even (>=2) step count (v7x 2 TCs)
_VMEM_LIMIT = 48 * 1024 * 1024


def _round_up(x, m):
    return ((x + m - 1) // m) * m


def _choose_row_tile(B, block_rows):
    """Pick (tm, b_pad) so padded work stays close to B and steps stay big."""
    block_rows = max(_SUBLANE, min(block_rows, _MAX_TM))
    n_steps = -(-B // block_rows)                      # ceil
    if B >= _SPLIT_ROWS:
        n_steps = max(n_steps, 2)
        n_steps += n_steps % 2                         # even -> both v7x cores busy
    tm = _round_up(-(-B // n_steps), _SUBLANE)
    tm = min(tm, _MAX_TM)
    b_pad = _round_up(B, tm)
    return tm, b_pad


def _mlp_kernel(x_ref, w1_ref, b1_ref, w2_ref, b2_ref, w3_ref, b3_ref, o_ref):
    # X arrives as f32 (half the wrapper HBM traffic vs. a separate cast pass);
    # cast to bf16 in-vreg for the MXU.  All accumulation / bias / ReLU in f32.
    x = x_ref[...].astype(jnp.bfloat16)
    h1 = jnp.dot(x, w1_ref[...], preferred_element_type=jnp.float32)
    h1 = jnp.maximum(h1 + b1_ref[...], 0.0)
    h2 = jnp.dot(h1.astype(jnp.bfloat16), w2_ref[...],
                 preferred_element_type=jnp.float32)
    h2 = jnp.maximum(h2 + b2_ref[...], 0.0)
    out = jnp.dot(h2.astype(jnp.bfloat16), w3_ref[...],
                  preferred_element_type=jnp.float32)
    # Narrow (tm, out_dim) f32 store: block last dim equals the full array dim,
    # so the (8,128) rule is satisfied and only real logits hit HBM.
    o_ref[...] = (out + b3_ref[...]).astype(o_ref.dtype)


@functools.partial(jax.jit, static_argnames=("block_rows",))
def discrete_policy_forward(x, params, *, block_rows=2048):
    """3-layer MLP forward (logits) in a single batch-tiled Pallas kernel.

    x:      [B, input_dim] float32
    params: dict with w1[in,h0], b1[1,h0], w2[h0,h1], b2[1,h1],
            w3[h1,out], b3[1,out]   (weights stored [in, out], i.e. X @ W + b)
    """
    w1, b1 = params["w1"], params["b1"]
    w2, b2 = params["w2"], params["b2"]
    w3, b3 = params["w3"], params["b3"]

    B, in_dim = x.shape
    h0 = w1.shape[1]
    h1 = w2.shape[1]
    out_dim = w3.shape[1]

    tm, b_pad = _choose_row_tile(B, block_rows)
    if b_pad != B:
        # Zero-pad rows; padded rows produce bias-derived logits that are
        # sliced off below (keep this invariant if aliasing is ever added).
        x = jnp.pad(x, ((0, b_pad - B), (0, 0)))

    # Weights in bf16 (MXU operand width, half the resident-DMA bytes);
    # biases stay f32.  These casts fuse under jit and happen once.
    w1b = w1.astype(jnp.bfloat16)
    w2b = w2.astype(jnp.bfloat16)
    w3b = w3.astype(jnp.bfloat16)

    # Whole-array block with a constant index map -> DMA'd once, stays resident.
    whole = lambda arr: pl.BlockSpec(arr.shape, lambda i: (0, 0))

    flops = 2 * b_pad * (in_dim * h0 + h0 * h1 + h1 * out_dim)
    bytes_accessed = (
        b_pad * in_dim * 4                                  # X (f32)
        + (in_dim * h0 + h0 * h1 + h1 * out_dim) * 2        # bf16 weights
        + (h0 + h1 + out_dim) * 4                           # f32 biases
        + b_pad * out_dim * 4                               # logits (f32)
    )

    out = pl.pallas_call(
        _mlp_kernel,
        out_shape=jax.ShapeDtypeStruct((b_pad, out_dim), jnp.float32),
        grid=(b_pad // tm,),
        in_specs=[
            pl.BlockSpec((tm, in_dim), lambda i: (i, 0)),
            whole(w1b), whole(b1),
            whole(w2b), whole(b2),
            whole(w3b), whole(b3),
        ],
        out_specs=pl.BlockSpec((tm, out_dim), lambda i: (i, 0)),
        compiler_params=pltpu.CompilerParams(
            dimension_semantics=("parallel",),
            vmem_limit_bytes=_VMEM_LIMIT),
        cost_estimate=pl.CostEstimate(
            flops=flops, transcendentals=0, bytes_accessed=bytes_accessed),
    )(x, w1b, b1, w2b, b2, w3b, b3)

    return out[:B]


def init_params(key, input_dim, output_dim, hidden_dim=(128, 64)):
    """Deterministic init mimicking nn.Linear default (U(-1/sqrt(fan_in), ...))."""
    dims = [input_dim, *hidden_dim, output_dim]
    params = {}
    for i in range(3):
        fan_in, fan_out = dims[i], dims[i + 1]
        key, kw, kb = jax.random.split(key, 3)
        bound = 1.0 / jnp.sqrt(jnp.float32(fan_in))
        params[f"w{i+1}"] = jax.random.uniform(
            kw, (fan_in, fan_out), jnp.float32, -bound, bound)
        params[f"b{i+1}"] = jax.random.uniform(
            kb, (1, fan_out), jnp.float32, -bound, bound)
    return params


def _reference_forward(x, params):
    """Pure-JAX reference mirroring the kernel's bf16 operand quantization."""
    f32 = jnp.float32
    hi = jax.lax.Precision.HIGHEST
    q = lambda a: a.astype(jnp.bfloat16).astype(f32)
    h = jnp.maximum(jnp.dot(q(x), q(params["w1"]), precision=hi) + params["b1"], 0.0)
    h = jnp.maximum(jnp.dot(q(h), q(params["w2"]), precision=hi) + params["b2"], 0.0)
    return jnp.dot(q(h), q(params["w3"]), precision=hi) + params["b3"]


if __name__ == "__main__":
    INPUT_DIM = 8      # observation size
    OUTPUT_DIM = 6     # number of discrete actions
    BATCH = 2

    key = jax.random.PRNGKey(0)
    key, kx = jax.random.split(key)
    x = jax.random.normal(kx, (BATCH, INPUT_DIM), jnp.float32)
    params = init_params(key, INPUT_DIM, OUTPUT_DIM)

    logits = discrete_policy_forward(x, params)
    jax.block_until_ready(logits)

    ref = _reference_forward(x, params)
    assert logits.shape == (BATCH, OUTPUT_DIM)
    assert jnp.allclose(logits, ref, atol=1e-4, rtol=1e-4), "mismatch vs reference"

    print("KERNEL_OK")
</pallas_src>

<mosaic_0001>
module attributes {stable_mosaic.version = 11 : i64} {
  func.func @_mlp_kernel(%arg0: i32, %arg1: memref<16x8xf32, #tpu.memory_space<vmem>>, %arg2: memref<8x128xbf16, #tpu.memory_space<vmem>>, %arg3: memref<1x128xf32, #tpu.memory_space<vmem>>, %arg4: memref<128x64xbf16, #tpu.memory_space<vmem>>, %arg5: memref<1x64xf32, #tpu.memory_space<vmem>>, %arg6: memref<64x6xbf16, #tpu.memory_space<vmem>>, %arg7: memref<1x6xf32, #tpu.memory_space<vmem>>, %arg8: memref<16x6xf32, #tpu.memory_space<vmem>>) attributes {dimension_semantics = [#tpu.dimension_semantics<parallel>], iteration_bounds = array<i64: 1>, scalar_prefetch = 0 : i64, scratch_operands = 0 : i64, tpu.core_type = #tpu.core_type<tc>, window_params = [{transform_indices = @transform_0, window_bounds = array<i64: 16, 8>}, {pipeline_mode = #tpu.pipeline_mode<synchronous>, transform_indices = @transform_1, window_bounds = array<i64: 8, 128>}, {pipeline_mode = #tpu.pipeline_mode<synchronous>, transform_indices = @transform_2, window_bounds = array<i64: 1, 128>}, {pipeline_mode = #tpu.pipeline_mode<synchronous>, transform_indices = @transform_3, window_bounds = array<i64: 128, 64>}, {pipeline_mode = #tpu.pipeline_mode<synchronous>, transform_indices = @transform_4, window_bounds = array<i64: 1, 64>}, {pipeline_mode = #tpu.pipeline_mode<synchronous>, transform_indices = @transform_5, window_bounds = array<i64: 64, 6>}, {pipeline_mode = #tpu.pipeline_mode<synchronous>, transform_indices = @transform_6, window_bounds = array<i64: 1, 6>}, {transform_indices = @transform_7, window_bounds = array<i64: 16, 6>}]} {
    %c0 = arith.constant 0 : index
    %c0_0 = arith.constant 0 : index
    %0 = vector.load %arg1[%c0, %c0_0] : memref<16x8xf32, #tpu.memory_space<vmem>>, vector<16x8xf32>
    %1 = arith.truncf %0 : vector<16x8xf32> to vector<16x8xbf16>
    %c0_1 = arith.constant 0 : index
    %c0_2 = arith.constant 0 : index
    %2 = vector.load %arg2[%c0_1, %c0_2] : memref<8x128xbf16, #tpu.memory_space<vmem>>, vector<8x128xbf16>
    %cst = arith.constant dense<0.000000e+00> : vector<16x128xf32>
    %3 = tpu.matmul %1, %2, %cst {dimension_numbers = #tpu.dot_dimension_numbers<[1], [0], [0], [1], [0, 0, 1, 1], [], []>} : vector<16x8xbf16>, vector<8x128xbf16>, vector<16x128xf32> -> vector<16x128xf32>
    %c0_3 = arith.constant 0 : index
    %c0_4 = arith.constant 0 : index
    %4 = vector.load %arg3[%c0_3, %c0_4] : memref<1x128xf32, #tpu.memory_space<vmem>>, vector<1x128xf32>
    %5 = vector.broadcast %4 : vector<1x128xf32> to vector<16x128xf32>
    %6 = arith.addf %3, %5 : vector<16x128xf32>
    %cst_5 = arith.constant 0.000000e+00 : f32
    %7 = vector.broadcast %cst_5 : f32 to vector<16x128xf32>
    %8 = arith.maximumf %6, %7 : vector<16x128xf32>
    %9 = arith.truncf %8 : vector<16x128xf32> to vector<16x128xbf16>
    %c0_6 = arith.constant 0 : index
    %c0_7 = arith.constant 0 : index
    %10 = vector.load %arg4[%c0_6, %c0_7] : memref<128x64xbf16, #tpu.memory_space<vmem>>, vector<128x64xbf16>
    %cst_8 = arith.constant dense<0.000000e+00> : vector<16x64xf32>
    %11 = tpu.matmul %9, %10, %cst_8 {dimension_numbers = #tpu.dot_dimension_numbers<[1], [0], [0], [1], [0, 0, 1, 1], [], []>} : vector<16x128xbf16>, vector<128x64xbf16>, vector<16x64xf32> -> vector<16x64xf32>
    %c0_9 = arith.constant 0 : index
    %c0_10 = arith.constant 0 : index
    %12 = vector.load %arg5[%c0_9, %c0_10] : memref<1x64xf32, #tpu.memory_space<vmem>>, vector<1x64xf32>
    %13 = vector.broadcast %12 : vector<1x64xf32> to vector<16x64xf32>
    %14 = arith.addf %11, %13 : vector<16x64xf32>
    %cst_11 = arith.constant 0.000000e+00 : f32
    %15 = vector.broadcast %cst_11 : f32 to vector<16x64xf32>
    %16 = arith.maximumf %14, %15 : vector<16x64xf32>
    %17 = arith.truncf %16 : vector<16x64xf32> to vector<16x64xbf16>
    %c0_12 = arith.constant 0 : index
    %c0_13 = arith.constant 0 : index
    %18 = vector.load %arg6[%c0_12, %c0_13] : memref<64x6xbf16, #tpu.memory_space<vmem>>, vector<64x6xbf16>
    %cst_14 = arith.constant dense<0.000000e+00> : vector<16x6xf32>
    %19 = tpu.matmul %17, %18, %cst_14 {dimension_numbers = #tpu.dot_dimension_numbers<[1], [0], [0], [1], [0, 0, 1, 1], [], []>} : vector<16x64xbf16>, vector<64x6xbf16>, vector<16x6xf32> -> vector<16x6xf32>
    %c0_15 = arith.constant 0 : index
    %c0_16 = arith.constant 0 : index
    %20 = vector.load %arg7[%c0_15, %c0_16] : memref<1x6xf32, #tpu.memory_space<vmem>>, vector<1x6xf32>
    %21 = vector.broadcast %20 : vector<1x6xf32> to vector<16x6xf32>
    %22 = arith.addf %19, %21 : vector<16x6xf32>
    %c0_17 = arith.constant 0 : index
    %c0_18 = arith.constant 0 : index
    %23 = vector.load %arg8[%c0_17, %c0_18] : memref<16x6xf32, #tpu.memory_space<vmem>>, vector<16x6xf32>
    tpu.vector_store %arg8[%c0_17, %c0_18], %22 {strides = array<i32>} : memref<16x6xf32, #tpu.memory_space<vmem>>, vector<16x6xf32>,
    return
  }
  func.func @transform_0(%arg0: i32) -> (i32, i32) {
    %c0_i32 = arith.constant 0 : i32
    %c0_i32_0 = arith.constant 0 : i32
    return %arg0, %c0_i32 : i32, i32
  }
  func.func @transform_1(%arg0: i32) -> (i32, i32) {
    %c0_i32 = arith.constant 0 : i32
    %c0_i32_0 = arith.constant 0 : i32
    %c0_i32_1 = arith.constant 0 : i32
    return %c0_i32, %c0_i32_0 : i32, i32
  }
  func.func @transform_2(%arg0: i32) -> (i32, i32) {
    %c0_i32 = arith.constant 0 : i32
    %c0_i32_0 = arith.constant 0 : i32
    %c0_i32_1 = arith.constant 0 : i32
    return %c0_i32, %c0_i32_0 : i32, i32
  }
  func.func @transform_3(%arg0: i32) -> (i32, i32) {
    %c0_i32 = arith.constant 0 : i32
    %c0_i32_0 = arith.constant 0 : i32
    %c0_i32_1 = arith.constant 0 : i32
    return %c0_i32, %c0_i32_0 : i32, i32
  }
  func.func @transform_4(%arg0: i32) -> (i32, i32) {
    %c0_i32 = arith.constant 0 : i32
    %c0_i32_0 = arith.constant 0 : i32
    %c0_i32_1 = arith.constant 0 : i32
    return %c0_i32, %c0_i32_0 : i32, i32
  }
  func.func @transform_5(%arg0: i32) -> (i32, i32) {
    %c0_i32 = arith.constant 0 : i32
    %c0_i32_0 = arith.constant 0 : i32
    %c0_i32_1 = arith.constant 0 : i32
    return %c0_i32, %c0_i32_0 : i32, i32
  }
  func.func @transform_6(%arg0: i32) -> (i32, i32) {
    %c0_i32 = arith.constant 0 : i32
    %c0_i32_0 = arith.constant 0 : i32
    %c0_i32_1 = arith.constant 0 : i32
    return %c0_i32, %c0_i32_0 : i32, i32
  }
  func.func @transform_7(%arg0: i32) -> (i32, i32) {
    %c0_i32 = arith.constant 0 : i32
    %c0_i32_0 = arith.constant 0 : i32
    return %arg0, %c0_i32 : i32, i32
  }
}

</mosaic_0001>

<llo_original>
// kernel: discrete_policy_forward.1
$region0: #{discrete_policy_forward.1}
  #allocation0 [shape = 'u32[]', space=smem, size = 0x4, offset = 0x4, fixed_abs, tag = 'smem constant byte address 0x4 - core index']
  #allocation1 [shape = 'u32[72,128]{1,0:T(1,128)}', space=vmem, size = 0x9000, scoped, tag = 'internal scratch']
  %s0 = inlined_call_operand.vmem [shape: f32[16,8], index: 0, kind: input, shape index: {}]
  %s1 = inlined_call_operand.vmem [shape: bf16[8,128], index: 1, kind: input, shape index: {}]
  %s2 = inlined_call_operand.vmem [shape: f32[1,128], index: 2, kind: input, shape index: {}]
  %s3 = inlined_call_operand.vmem [shape: bf16[128,64], index: 3, kind: input, shape index: {}]
  %s4 = inlined_call_operand.vmem [shape: f32[1,64], index: 4, kind: input, shape index: {}]
  %s5 = inlined_call_operand.vmem [shape: bf16[64,6], index: 5, kind: input, shape index: {}]
  %s6 = inlined_call_operand.vmem [shape: f32[1,6], index: 6, kind: input, shape index: {}]
  %s7 = inlined_call_operand.vmem [shape: f32[16,6], index: 7, kind: output, shape index: {}]
  %s8 = sld [smem:[#allocation0]]
  $region38: #{discrete_policy_forward.1} parent=0
    _
  %s10 = ssub.s32 1, %s8
  %s11 = scalar_select 0, %s10, %s8
  // Predicated region
  $region2: #{discrete_policy_forward.1} parent=0 // pred_check
    _
  $region3: #{discrete_policy_forward.1} parent=0 // pred_check_branch
    %13 = sbr.rel (0) target = $region5
  $region4: #{discrete_policy_forward.1} parent=0 // pred_region
    _
  $region5: #{discrete_policy_forward.1} parent=0 // pred_fallthru
    _
  // Predicated region
  $region6: #{discrete_policy_forward.1} parent=0 // pred_check
    _
  $region7: #{discrete_policy_forward.1} parent=0 // pred_check_branch
    %15 = sbr.rel (0) target = $region9
  $region8: #{discrete_policy_forward.1} parent=0 // pred_region
    _
  $region9: #{discrete_policy_forward.1} parent=0 // pred_fallthru
    _
  // Predicated region
  $region10: #{discrete_policy_forward.1} parent=0 // pred_check
    _
  $region11: #{discrete_policy_forward.1} parent=0 // pred_check_branch
    %17 = sbr.rel (0) target = $region13
  $region12: #{discrete_policy_forward.1} parent=0 // pred_region
    _
  $region13: #{discrete_policy_forward.1} parent=0 // pred_fallthru
    _
  // Predicated region
  $region14: #{discrete_policy_forward.1} parent=0 // pred_check
    _
  $region15: #{discrete_policy_forward.1} parent=0 // pred_check_branch
    %19 = sbr.rel (0) target = $region17
  $region16: #{discrete_policy_forward.1} parent=0 // pred_region
    _
  $region17: #{discrete_policy_forward.1} parent=0 // pred_fallthru
    _
  // Predicated region
  $region18: #{discrete_policy_forward.1} parent=0 // pred_check
    _
  $region19: #{discrete_policy_forward.1} parent=0 // pred_check_branch
    %21 = sbr.rel (0) target = $region21
  $region20: #{discrete_policy_forward.1} parent=0 // pred_region
    _
  $region21: #{discrete_policy_forward.1} parent=0 // pred_fallthru
    _
  // Predicated region
  $region22: #{discrete_policy_forward.1} parent=0 // pred_check
    _
  $region23: #{discrete_policy_forward.1} parent=0 // pred_check_branch
    %23 = sbr.rel (0) target = $region25
  $region24: #{discrete_policy_forward.1} parent=0 // pred_region
    _
  $region25: #{discrete_policy_forward.1} parent=0 // pred_fallthru
    _
  // Predicated region
  $region26: #{discrete_policy_forward.1} parent=0 // pred_check
    _
  $region27: #{discrete_policy_forward.1} parent=0 // pred_check_branch
    %25 = sbr.rel (0) target = $region29
  $region28: #{discrete_policy_forward.1} parent=0 // pred_region
    _
  $region29: #{discrete_policy_forward.1} parent=0 // pred_fallthru
    _
  %v27 = vld [vmem:[%s0] sm:$0xff]
  %v28 = vld [vmem:[%s0 + $0x8] sm:$0xff]
  %v29 = vpack.c.bf16 %v28, %v27
  %v30 = vld [vmem:[%s1] sm:$0xf]
  %v31 = vld [vmem:[%s2] sm:$0x1]
  %v33 = vperm.slane %v31, 0
  %vm35 = vcmask 64512
  %v37 = vsel %vm35, %v29, 0
  %vm39 = vcmask 1043456
  %v41 = vsel %vm39, %v30, 0
  %43 = vmatpush.bf16.msra.mxu0 0
  %44 = vmatpush.bf16.msra.mxu0 0
  %45 = vmatpush.bf16.msra.mxu0 0
  %46 = vmatpush.bf16.msra.mxu0 0
  %47 = vmatpush.bf16.msra.mxu0 0
  %48 = vmatpush.bf16.msra.mxu0 0
  %49 = vmatpush.bf16.msra.mxu0 0
  %50 = vmatpush.bf16.msra.mxu0 %v41
  %51 = vmatmul.bf16.gmra.mxu0 %v37
  %v52 = vpop.f32.mrf.mxu0
  %v53 = vadd.f32 %v33, %v52
  %v54 = vpop.f32.mrf.mxu0
  %v55 = vadd.f32 %v33, %v54
  %56 = vdwg.mxu0
  %v57 = vmax.f32 %v53, 0.0
  %v58 = vmax.f32 %v55, 0.0
  %v59 = vpack.c.bf16 %v58, %v57
  %v60 = vld [vmem:[%s3] sm:$0xf]
  %v61 = vld [vmem:[%s3 + $0x4] sm:$0xf]
  %v62 = vld [vmem:[%s3 + $0x8] sm:$0xf]
  %v63 = vld [vmem:[%s3 + $0xc] sm:$0xf]
  %v64 = vld [vmem:[%s3 + $0x10] sm:$0xf]
  %v65 = vld [vmem:[%s3 + $0x14] sm:$0xf]
  %v66 = vld [vmem:[%s3 + $0x18] sm:$0xf]
  %v67 = vld [vmem:[%s3 + $0x1c] sm:$0xf]
  %v68 = vld [vmem:[%s3 + $0x20] sm:$0xf]
  %v69 = vld [vmem:[%s3 + $0x24] sm:$0xf]
  %v70 = vld [vmem:[%s3 + $0x28] sm:$0xf]
  %v71 = vld [vmem:[%s3 + $0x2c] sm:$0xf]
  %v72 = vld [vmem:[%s3 + $0x30] sm:$0xf]
  %v73 = vld [vmem:[%s3 + $0x34] sm:$0xf]
  %v74 = vld [vmem:[%s3 + $0x38] sm:$0xf]
  %v75 = vld [vmem:[%s3 + $0x3c] sm:$0xf]
  %v76 = vld [vmem:[%s4] sm:$0x1]
  %v78 = vperm.slane %v76, 0
  %v96 = vunpack.c.l.b16 %v60
  %v97 = vunpack.c.l.b16 %v61
  %v98 = vunpack.c.l.b16 %v62
  %v99 = vunpack.c.l.b16 %v63
  %v100 = vunpack.c.l.b16 %v64
  %v101 = vunpack.c.l.b16 %v65
  %v102 = vunpack.c.l.b16 %v66
  %v103 = vunpack.c.l.b16 %v67
  %v104 = vunpack.c.l.b16 %v68
  %v105 = vunpack.c.l.b16 %v69
  %v106 = vunpack.c.l.b16 %v70
  %v107 = vunpack.c.l.b16 %v71
  %v108 = vunpack.c.l.b16 %v72
  %v109 = vunpack.c.l.b16 %v73
  %v110 = vunpack.c.l.b16 %v74
  %v111 = vunpack.c.l.b16 %v75
  %v112 = vpack.c.b16 %v97, %v96
  %v113 = vpack.c.b16 %v99, %v98
  %v114 = vpack.c.b16 %v101, %v100
  %v115 = vpack.c.b16 %v103, %v102
  %v116 = vpack.c.b16 %v105, %v104
  %v117 = vpack.c.b16 %v107, %v106
  %v118 = vpack.c.b16 %v109, %v108
  %v119 = vpack.c.b16 %v111, %v110
  %128 = vmatpush.bf16.msra.mxu0 %v119
  %129 = vmatpush.bf16.msra.mxu0 %v118
  %130 = vmatpush.bf16.msra.mxu0 %v117
  %131 = vmatpush.bf16.msra.mxu0 %v116
  %132 = vmatpush.bf16.msra.mxu0 %v115
  %133 = vmatpush.bf16.msra.mxu0 %v114
  %134 = vmatpush.bf16.msra.mxu0 %v113
  %135 = vmatpush.bf16.msra.mxu0 %v112
  %136 = vmatmul.bf16.gmra.mxu0 %v59
  %v137 = vpop.f32.mrf.mxu0
  %v138 = vadd.f32 %v78, %v137
  %v139 = vpop.f32.mrf.mxu0
  %v140 = vadd.f32 %v78, %v139
  %141 = vdwg.mxu0
  %v142 = vmax.f32 %v138, 0.0
  %v143 = vmax.f32 %v140, 0.0
  %v144 = vpack.c.bf16 %v143, %v142
  %v145 = vld [vmem:[%s5] sm:$0xf]
  %v146 = vld [vmem:[%s5 + $0x4] sm:$0xf]
  %v147 = vld [vmem:[%s5 + $0x8] sm:$0xf]
  %v148 = vld [vmem:[%s5 + $0xc] sm:$0xf]
  %v149 = vld [vmem:[%s5 + $0x10] sm:$0xf]
  %v150 = vld [vmem:[%s5 + $0x14] sm:$0xf]
  %v151 = vld [vmem:[%s5 + $0x18] sm:$0xf]
  %v152 = vld [vmem:[%s5 + $0x1c] sm:$0xf]
  %v153 = vld [vmem:[%s6] sm:$0x1]
  %v155 = vperm.slane %v153, 0
  %v165 = vunpack.c.l.b16 %v145
  %v166 = vunpack.c.l.b16 %v146
  %v167 = vunpack.c.l.b16 %v147
  %v168 = vunpack.c.l.b16 %v148
  %v169 = vunpack.c.l.b16 %v149
  %v170 = vunpack.c.l.b16 %v150
  %v171 = vunpack.c.l.b16 %v151
  %v172 = vunpack.c.l.b16 %v152
  %v173 = vpack.c.b16 %v166, %v165
  %v174 = vpack.c.b16 %v168, %v167
  %v175 = vpack.c.b16 %v170, %v169
  %v176 = vpack.c.b16 %v172, %v171
  %vm181 = vcmask 523264
  %v183 = vsel %vm181, %v144, 0
  %185 = vmatpush.bf16.msra.mxu0 0
  %186 = vmatpush.bf16.msra.mxu0 0
  %187 = vmatpush.bf16.msra.mxu0 0
  %188 = vmatpush.bf16.msra.mxu0 0
  %189 = vmatpush.bf16.msra.mxu0 %v176
  %190 = vmatpush.bf16.msra.mxu0 %v175
  %191 = vmatpush.bf16.msra.mxu0 %v174
  %192 = vmatpush.bf16.msra.mxu0 %v173
  %193 = vmatmul.bf16.gmra.mxu0 %v183
  %v194 = vpop.f32.mrf.mxu0
  %v195 = vadd.f32 %v155, %v194
  %v196 = vpop.f32.mrf.mxu0
  %v197 = vadd.f32 %v155, %v196
  %198 = vdwg.mxu0
  %vm199 = vcmask 48128
  %200 = vst.msk [vmem:[%s7] sm:$0xff] %vm199, %v195
  %201 = vst.msk [vmem:[%s7 + $0x8] sm:$0xff] %vm199, %v197
  // Predicated region
  $region30: #{discrete_policy_forward.1} parent=0 // pred_check
    _
  $region31: #{discrete_policy_forward.1} parent=0 // pred_check_branch
    %203 = sbr.rel (0) target = $region33
  $region32: #{discrete_policy_forward.1} parent=0 // pred_region
    _
  $region33: #{discrete_policy_forward.1} parent=0 // pred_fallthru
    _
  // Predicated region
  $region34: #{discrete_policy_forward.1} parent=0 // pred_check
    _
  $region35: #{discrete_policy_forward.1} parent=0 // pred_check_branch
    %205 = sbr.rel (0) target = $region37
  $region36: #{discrete_policy_forward.1} parent=0 // pred_region
    _
  $region37: #{discrete_policy_forward.1} parent=0 // pred_fallthru
    _

</llo_original>
